<compile_context>
chip_gen: v5e
topology: v5e:2x2
jax: 0.10.0
libtpu: 0.0.40
codegen_flags: <defaults>
</compile_context>

<pallas_src>
import functools

import jax
import jax.numpy as jnp
from jax.experimental import pallas as pl
from jax.experimental.pallas import tpu as pltpu


_LANE = 128
_SUBLANE = 8
# Per x-input buffer byte budget; Pallas double-buffers it (~16 MiB total for
# the x stream), leaving ample headroom under v7x's 64 MiB physical VMEM.
_TARGET_BLOCK_BYTES = 8 * 1024 * 1024
# Raised scoped-VMEM limit: above v5e's 16 MiB default, below v7x's 64 MiB
# physical capacity.
_VMEM_LIMIT_BYTES = 48 * 1024 * 1024


def _round_up(v: int, m: int) -> int:
    return (v + m - 1) // m * m


def _pick_tiles(batch: int, dim: int, itemsize: int) -> tuple[int, int]:
    """Pick (batch_tile, feature_tile) by VMEM byte budget, not row count."""
    bytes_per_row = max(dim * itemsize, 1)

    # Feature tile: keep the whole row unless even an 8-row block would blow
    # the per-buffer budget (extremely wide dim); then split the reduction.
    if _SUBLANE * bytes_per_row > _TARGET_BLOCK_BYTES:
        tk = max(_LANE,
                 (_TARGET_BLOCK_BYTES // (_SUBLANE * itemsize)) // _LANE * _LANE)
    else:
        tk = dim

    # Batch tile: as many rows as fit in the byte budget (multiple of 8), but
    #  (a) never larger than the rounded-up batch (no over-padding), and
    #  (b) at most ~half the batch so the "parallel" axis has >= 2 grid steps
    #      and shards across both TensorCores on v7x.
    row_tile_bytes = max(tk * itemsize, 1)
    tb = max(_SUBLANE,
             (_TARGET_BLOCK_BYTES // row_tile_bytes) // _SUBLANE * _SUBLANE)
    b_round = _round_up(max(batch, 1), _SUBLANE)
    half = max(_SUBLANE, _round_up((batch + 1) // 2, _SUBLANE))
    tb = min(tb, b_round, half)
    return tb, tk


def _dual_kernel_single(x_ref, w_ref, o_ref):
    # x_ref: (tb, D), w_ref: (1, D), o_ref: (tb, 1).
    # Multiply in the input dtype (native bf16 VALU on v6e/v7x), accumulate
    # the row reduction in f32 (matches F.linear's accumulation behaviour).
    prod = (x_ref[...] * w_ref[...]).astype(jnp.float32)
    o_ref[...] = jnp.sum(prod, axis=-1, keepdims=True).astype(o_ref.dtype)


def _dual_kernel_split(nk: int, rem: int, x_ref, w_ref, o_ref, acc_ref):
    # Feature dim split across grid axis 1 (very wide dims only).
    # acc_ref: (tb, 1) f32 accumulator, resident across the k axis.
    k = pl.program_id(1)

    @pl.when(k == 0)
    def _():
        acc_ref[...] = jnp.zeros_like(acc_ref)

    prod = (x_ref[...] * w_ref[...]).astype(jnp.float32)
    if rem:  # static: last feature block is ragged -> mask garbage columns,
        # otherwise they would pollute real rows' accumulators.
        tk = prod.shape[1]
        col = jax.lax.broadcasted_iota(jnp.int32, prod.shape, 1)
        limit = jnp.where(k == nk - 1, rem, tk)
        prod = jnp.where(col < limit, prod, 0.0)

    acc_ref[...] += jnp.sum(prod, axis=-1, keepdims=True)
    o_ref[...] = acc_ref[...].astype(o_ref.dtype)


def dual_forward(x: jax.Array, weight: jax.Array, *, _tile_override=None) -> jax.Array:
    """x: (..., D), weight: (1, D) -> (..., 1).  Matches F.linear(x, weight)."""
    D = x.shape[-1]
    if weight.shape != (1, D):
        raise ValueError(f"weight must have shape (1, {D}), got {weight.shape}")

    lead_shape = x.shape[:-1]
    x2 = x.reshape(-1, D)
    B = x2.shape[0]
    if B == 0:
        return jnp.zeros((*lead_shape, 1), dtype=x.dtype)

    # Pre-cast the weight once in the wrapper (not per grid step in-kernel).
    w = weight.astype(x2.dtype)

    if _tile_override is None:
        tb, tk = _pick_tiles(B, D, x2.dtype.itemsize)
    else:
        tb, tk = _tile_override  # testing hook: must be (mult of 8, mult of 128 or D)

    nb = pl.cdiv(B, tb)
    nk = pl.cdiv(D, tk)

    if nk == 1:
        kernel = _dual_kernel_single
        scratch_shapes = []
    else:
        kernel = functools.partial(_dual_kernel_split, nk, D % tk)
        scratch_shapes = [pltpu.VMEM((tb, 1), jnp.float32)]

    out = pl.pallas_call(
        kernel,
        out_shape=jax.ShapeDtypeStruct((B, 1), x2.dtype),
        grid_spec=pltpu.PrefetchScalarGridSpec(
            num_scalar_prefetch=0,
            grid=(nb, nk),
            in_specs=[
                pl.BlockSpec((tb, tk), lambda i, k: (i, k)),  # stream x tiles
                pl.BlockSpec((1, tk), lambda i, k: (0, k)),   # weight (resident)
            ],
            out_specs=pl.BlockSpec((tb, 1), lambda i, k: (i, 0)),
            scratch_shapes=scratch_shapes,
        ),
        compiler_params=pltpu.CompilerParams(
            dimension_semantics=("parallel", "arbitrary"),  # batch shards over TCs
            vmem_limit_bytes=_VMEM_LIMIT_BYTES,
        ),
        cost_estimate=pl.CostEstimate(
            flops=2 * B * D,
            transcendentals=0,
            bytes_accessed=B * D * x2.dtype.itemsize
            + D * w.dtype.itemsize
            + B * x2.dtype.itemsize,
        ),
    )(x2, w)

    return out.reshape(*lead_shape, 1)


def make_dual_params(dim: int, value: float = 0.0, dtype=jnp.float32):
    # Matches Dual.reset_parameters(value=0.0): init.constant_(weight, value)
    return jnp.full((1, dim), value, dtype=dtype)


if __name__ == "__main__":
    key = jax.random.PRNGKey(0)
    kx, kw, kx2, kw2, kx3, kw3 = jax.random.split(key, 6)

    # 1) Default init (constant 0.0), 3-D batch whose flattened size (24) is
    #    ragged w.r.t. the chosen batch tile (exercises the pad-free path).
    B0, B1, D = 4, 6, 32
    x = jax.random.normal(kx, (B0, B1, D), dtype=jnp.float32)
    w0 = make_dual_params(D, value=0.0)
    out0 = jax.block_until_ready(dual_forward(x, w0))
    assert out0.shape == (B0, B1, 1)
    assert jnp.allclose(out0, jnp.zeros((B0, B1, 1), jnp.float32))

    # 2) Non-trivial weight, same input.
    w1 = jax.random.normal(kw, (1, D), dtype=jnp.float32)
    out1 = jax.block_until_ready(dual_forward(x, w1))
    ref1 = x @ w1.T
    assert out1.shape == (B0, B1, 1)
    assert jnp.allclose(out1, ref1, atol=1e-5, rtol=1e-5)

    # 3) Force the split-feature-dim reduction path (ragged last k block).
    xs = jax.random.normal(kx2, (16, 320), dtype=jnp.float32)
    ws = jax.random.normal(kw2, (1, 320), dtype=jnp.float32)
    outs = jax.block_until_ready(dual_forward(xs, ws, _tile_override=(8, 128)))
    refs = xs @ ws.T
    assert jnp.allclose(outs, refs, atol=1e-4, rtol=1e-4)

    # 4) bf16 activations: bf16 multiply, f32 accumulation.
    xb = jax.random.normal(kx3, (24, 64), dtype=jnp.bfloat16)
    wb = jax.random.normal(kw3, (1, 64), dtype=jnp.float32)
    outb = jax.block_until_ready(dual_forward(xb, wb))
    refb = xb.astype(jnp.float32) @ wb.astype(jnp.bfloat16).astype(jnp.float32).T
    assert outb.shape == (24, 1)
    assert jnp.allclose(outb.astype(jnp.float32), refb, atol=0.1, rtol=0.05)

    print("KERNEL_OK")
</pallas_src>

<mosaic_0001>
module attributes {stable_mosaic.version = 11 : i64} {
  func.func @_dual_kernel_single(%arg0: i32, %arg1: i32, %arg2: memref<16x32xf32, #tpu.memory_space<vmem>>, %arg3: memref<1x32xf32, #tpu.memory_space<vmem>>, %arg4: memref<16x1xf32, #tpu.memory_space<vmem>>) attributes {dimension_semantics = [#tpu.dimension_semantics<parallel>, #tpu.dimension_semantics<arbitrary>], iteration_bounds = array<i64: 2, 1>, scalar_prefetch = 0 : i64, scratch_operands = 0 : i64, tpu.core_type = #tpu.core_type<tc>, window_params = [{transform_indices = @transform_0, window_bounds = array<i64: 16, 32>}, {transform_indices = @transform_1, window_bounds = array<i64: 1, 32>}, {transform_indices = @transform_2, window_bounds = array<i64: 16, 1>}]} {
    %c0 = arith.constant 0 : index
    %c0_0 = arith.constant 0 : index
    %0 = vector.load %arg2[%c0, %c0_0] : memref<16x32xf32, #tpu.memory_space<vmem>>, vector<16x32xf32>
    %c0_1 = arith.constant 0 : index
    %c0_2 = arith.constant 0 : index
    %1 = vector.load %arg3[%c0_1, %c0_2] : memref<1x32xf32, #tpu.memory_space<vmem>>, vector<1x32xf32>
    %2 = vector.broadcast %1 : vector<1x32xf32> to vector<16x32xf32>
    %3 = arith.mulf %0, %2 : vector<16x32xf32>
    %cst = arith.constant dense<0.000000e+00> : vector<16xf32>
    %4 = vector.multi_reduction <add>, %3, %cst [1] : vector<16x32xf32> to vector<16xf32>
    %5 = vector.shape_cast %4 : vector<16xf32> to vector<16x1xf32>
    %c0_3 = arith.constant 0 : index
    %c0_4 = arith.constant 0 : index
    %6 = vector.load %arg4[%c0_3, %c0_4] : memref<16x1xf32, #tpu.memory_space<vmem>>, vector<16x1xf32>
    tpu.vector_store %arg4[%c0_3, %c0_4], %5 {strides = array<i32>} : memref<16x1xf32, #tpu.memory_space<vmem>>, vector<16x1xf32>,
    return
  }
  func.func @transform_0(%arg0: i32, %arg1: i32) -> (i32, i32) {
    %c0_i32 = arith.constant 0 : i32
    return %arg0, %arg1 : i32, i32
  }
  func.func @transform_1(%arg0: i32, %arg1: i32) -> (i32, i32) {
    %c0_i32 = arith.constant 0 : i32
    %c0_i32_0 = arith.constant 0 : i32
    return %c0_i32, %arg1 : i32, i32
  }
  func.func @transform_2(%arg0: i32, %arg1: i32) -> (i32, i32) {
    %c0_i32 = arith.constant 0 : i32
    %c0_i32_0 = arith.constant 0 : i32
    return %arg0, %c0_i32 : i32, i32
  }
}

</mosaic_0001>

<llo_original>
// kernel: tpu_custom_call.1
$region0: #{tpu_custom_call.1}
  #allocation0 [shape = 'u32[]', space=smem, size = 0x4, offset = 0x4, fixed_abs, tag = 'smem constant byte address 0x4 - core index']
  #allocation1 [shape = 'u32[72,128]{1,0:T(1,128)}', space=vmem, size = 0x9000, scoped, tag = 'internal scratch']
  %s0 = inlined_call_operand.hbm [shape: f32[24,32], index: 0, kind: input, shape index: {}]
  %s1 = inlined_call_operand.hbm [shape: f32[1,32], index: 1, kind: input, shape index: {}]
  %s2 = inlined_call_operand.vmem [shape: f32[24,1], index: 2, kind: output, shape index: {}]
  %s3 = sld [smem:[#allocation0]]
  $region97: #{tpu_custom_call.1} parent=0
    _
  %s5 = ssub.s32 1, %s3
  %s6 = scalar_select 0, %s5, %s3
  $region1: #{tpu_custom_call.1} parent=0
    #allocation2 [shape = 'u8[16384]{0}', space=vmem, size = 0x4000, scoped, tag = 'input window, operand 0']
    #allocation3 [shape = 's32[2]{0}', space=sflag, size = 0x8, scoped, tag = 'scoped memory for tpu_custom_call.1']
    #allocation4 [shape = 'u8[512]{0}', space=vmem, size = 0x400, scoped, tag = 'input window, operand 1, single buffered']
    #allocation5 [shape = 's32[1]{0}', space=sflag, size = 0x4, scoped, tag = 'scoped memory for tpu_custom_call.1']
    #allocation6 [shape = 'u8[16384]{0}', space=vmem, size = 0x4000, scoped, tag = 'output window, operand 0']
    %7 = vsyncpa [#allocation3], 0
    %s8 = scalar_lea.sflag [#allocation3], 1
    %9 = vsyncpa %s8, 0
    %10 = vsyncpa [#allocation5], 0
    loop: start=0, step=1, limit=4
    $region2: #{tpu_custom_call.1} parent=1 // loop_pre_header
      _
    $region3: #{tpu_custom_call.1} parent=1 // loop_header
      %s12 = sphi 0, %s16
      %p13 = scmp.ge.s32.totalorder %s12, 4
      %s19 = sphi 0, %s31
      %s20 = sphi 0, %s27
      %s21 = sphi 0, %s19
      %s22 = sphi 0, %s20
      %s23 = sphi 0, %s21
      %s24 = sphi 0, %s22
      %s36 = sphi 0, %s38
      %s39 = sphi 0, %s36
      %s40 = sphi 0, %s39
      %s56 = sphi 0, %s40
      %s62 = sphi 0, %s64
      %s65 = sphi 0, %s62
      %s66 = sphi 0, %s65
      %s82 = sphi 0, %s66
      %s88 = sphi 0, %s90
      %s91 = sphi 0, %s88
      %s92 = sphi 0, %s91
      %s108 = sphi 0, %s92
    $region4: #{tpu_custom_call.1} parent=1 // loop_header_branch
      %15 = sbr.rel (%p13) target = $region8
    $region5: #{tpu_custom_call.1} parent=1 // loop_body
      %s17 = ssub.s32 %s12, 1
      %s18 = ssub.s32 %s12, 2
      %s25 = sadd.s32 1, %s20
      %p26 = scmp.ge.s32.totalorder %s25, 1
      %s27 = scalar_select %p26, 0, %s25
      %s28 = sadd.s32 1, %s19
      %s29 = scalar_select %p26, %s28, %s19
      %p30 = scmp.ge.s32.totalorder %s29, 2
      %s31 = scalar_select %p30, 0, %s29
      %s32 = ssub.s32 %s19, %s31
      %s33 = ssub.s32 %s20, %s27
      %s34 = sor.u32 %s32, %s33
      %p35 = scmp.eq.s32.totalorder %s34, 0
      %s37 = sadd.s32 %s36, 1
      %s38 = scalar_select %p35, %s36, %s37
      %p41 = pneg %p35
      %p42 = scmp.eq.s32.totalorder %s12, 1
      %p43 = por %p41, %p42
      %p44 = scmp.ne.s32.totalorder %s36, %s39
      %p45 = scmp.eq.s32.totalorder %s12, 0
      %p46 = por %p44, %p45
      %p47 = scmp.ne.s32.totalorder %s36, %s39
      %p48 = scmp.eq.s32.totalorder %s17, 1
      %p49 = por %p47, %p48
      %p50 = scmp.ne.s32.totalorder %s39, %s40
      %p51 = scmp.eq.s32.totalorder %s17, 0
      %p52 = por %p50, %p51
      %p53 = scmp.ne.s32.totalorder %s39, %s40
      %p54 = scmp.eq.s32.totalorder %s18, 1
      %p55 = por %p53, %p54
      %p57 = scmp.ne.s32.totalorder %s40, %s56
      %p58 = scmp.eq.s32.totalorder %s18, 0
      %p59 = por %p57, %p58
      %s60 = ssub.s32 %s20, %s27
      %p61 = scmp.eq.s32.totalorder %s60, 0
      %s63 = sadd.s32 %s62, 1
      %s64 = scalar_select %p61, %s62, %s63
      %p67 = pneg %p61
      %p68 = scmp.eq.s32.totalorder %s12, 1
      %p69 = por %p67, %p68
      %p70 = scmp.ne.s32.totalorder %s62, %s65
      %p71 = scmp.eq.s32.totalorder %s12, 0
      %p72 = por %p70, %p71
      %p73 = scmp.ne.s32.totalorder %s62, %s65
      %p74 = scmp.eq.s32.totalorder %s17, 1
      %p75 = por %p73, %p74
      %p76 = scmp.ne.s32.totalorder %s65, %s66
      %p77 = scmp.eq.s32.totalorder %s17, 0
      %p78 = por %p76, %p77
      %p79 = scmp.ne.s32.totalorder %s65, %s66
      %p80 = scmp.eq.s32.totalorder %s18, 1
      %p81 = por %p79, %p80
      %p83 = scmp.ne.s32.totalorder %s66, %s82
      %p84 = scmp.eq.s32.totalorder %s18, 0
      %p85 = por %p83, %p84
      %s86 = ssub.s32 %s19, %s31
      %p87 = scmp.eq.s32.totalorder %s86, 0
      %s89 = sadd.s32 %s88, 1
      %s90 = scalar_select %p87, %s88, %s89
      %p93 = pneg %p87
      %p94 = scmp.eq.s32.totalorder %s12, 1
      %p95 = por %p93, %p94
      %p96 = scmp.ne.s32.totalorder %s88, %s91
      %p97 = scmp.eq.s32.totalorder %s12, 0
      %p98 = por %p96, %p97
      %p99 = scmp.ne.s32.totalorder %s88, %s91
      %p100 = scmp.eq.s32.totalorder %s17, 1
      %p101 = por %p99, %p100
      %p102 = scmp.ne.s32.totalorder %s91, %s92
      %p103 = scmp.eq.s32.totalorder %s17, 0
      %p104 = por %p102, %p103
      %p105 = scmp.ne.s32.totalorder %s91, %s92
      %p106 = scmp.eq.s32.totalorder %s18, 1
      %p107 = por %p105, %p106
      %p109 = scmp.ne.s32.totalorder %s92, %s108
      %p110 = scmp.eq.s32.totalorder %s18, 0
      %p111 = por %p109, %p110
      %p112 = scmp.le.s32.totalorder 1, %s12
      %p113 = scmp.lt.s32.totalorder %s12, 3
      %p114 = pnand %p112, %p113
      %p115 = pneg %p114
      // Predicated region
      $region9: #{tpu_custom_call.1} parent=5 // pred_check
        _
      $region10: #{tpu_custom_call.1} parent=5 // pred_check_branch
        %117 = sbr.rel (%p114) target = $region12
      $region11: #{tpu_custom_call.1} parent=5 // pred_region
        %s118 = ssub.s32 %s12, 1
        // Predicated region
        $region13: #{tpu_custom_call.1} parent=11 // pred_check
          %p119 = pneg %p78
        $region14: #{tpu_custom_call.1} parent=11 // pred_check_branch
          %121 = sbr.rel (%p119) target = $region16
        $region15: #{tpu_custom_call.1} parent=11 // pred_region
          %123 = vsyncadd [#allocation5], 0
          %s124 = scalar_lea.hbm %s1, %s22
          %s126 = sshll.u32 %s124, 4
          %s127 = int_to_ptr.hbm [resolvable:$true] %s126
          %s128 = sshll.u32 [#allocation4], 4
          %s129 = int_to_ptr.vmem [resolvable:$true] %s128
          %131 = dma.hbm_to_vmem [thread:$0]  %s127, 16, %s129, [#allocation5]
        $region16: #{tpu_custom_call.1} parent=11 // pred_fallthru
          _
      $region12: #{tpu_custom_call.1} parent=5 // pred_fallthru
        _
      %p132 = scmp.lt.s32.totalorder %s12, 2
      // Predicated region
      $region17: #{tpu_custom_call.1} parent=5 // pred_check
        %p133 = pneg %p132
      $region18: #{tpu_custom_call.1} parent=5 // pred_check_branch
        %135 = sbr.rel (%p133) target = $region20
      $region19: #{tpu_custom_call.1} parent=5 // pred_region
        // Predicated region
        $region21: #{tpu_custom_call.1} parent=19 // pred_check
          %p136 = pneg %p46
        $region22: #{tpu_custom_call.1} parent=19 // pred_check_branch
          %138 = sbr.rel (%p136) target = $region24
        $region23: #{tpu_custom_call.1} parent=19 // pred_region
          %s139 = sand.u32 %s36, 1
          %s140 = scalar_lea.sflag [#allocation3], %s139
          %s141 = sand.u32 %s36, 1
          %s142 = smul.addr %s141, 16
          %s143 = scalar_lea.vmem [#allocation2], %s142
          %s144 = smul.u32 2, %s19
          %s145 = ssub.s32 3, %s144
          %p146 = scmp.lt.s32.totalorder %s145, 2
          %s147 = scalar_select %p146, %s145, 2
          %s148 = smul.u32 8, %s147
          %s149 = ssub.s32 16, %s148
          %s150 = sshll.u32 %s149, 4
          %151 = vsyncadd %s140, %s150
          %p152 = scmp.ne.s32.totalorder 0, %s148
          %s153 = sadd.s32 %s20, %s144
          %s154 = smul.addr %s153, 8
          %s155 = scalar_lea.hbm %s0, %s154
          %s156 = smul.u32 8, %s147
          %s157 = sshll.u32 %s155, 4
          %s158 = int_to_ptr.hbm [resolvable:$true] %s157
          %s159 = sshll.u32 %s143, 4
          %s160 = int_to_ptr.vmem [resolvable:$true] %s159
          %s161 = sshll.u32 %s156, 4
          %165 = dma.hbm_to_vmem [thread:$0]  (%p152), %s158, %s161, %s160, %s140, 128, 128, 8
        $region24: #{tpu_custom_call.1} parent=19 // pred_fallthru
          _
      $region20: #{tpu_custom_call.1} parent=5 // pred_fallthru
        _
      %p166 = scmp.le.s32.totalorder 1, %s12
      %p167 = scmp.lt.s32.totalorder %s12, 3
      %p168 = pnand %p166, %p167
      %p169 = pneg %p168
      // Predicated region
      $region25: #{tpu_custom_call.1} parent=5 // pred_check
        _
      $region26: #{tpu_custom_call.1} parent=5 // pred_check_branch
        %171 = sbr.rel (%p168) target = $region28
      $region27: #{tpu_custom_call.1} parent=5 // pred_region
        %s172 = ssub.s32 %s12, 1
        %s173 = sand.u32 %s39, 1
        %s174 = scalar_lea.sflag [#allocation3], %s173
        %s175 = sand.u32 %s39, 1
        %s176 = smul.addr %s175, 16
        %s177 = scalar_lea.vmem [#allocation2], %s176
        // Predicated region
        $region29: #{tpu_custom_call.1} parent=27 // pred_check
          %p178 = pneg %p52
        $region30: #{tpu_custom_call.1} parent=27 // pred_check_branch
          %180 = sbr.rel (%p178) target = $region32
        $region31: #{tpu_custom_call.1} parent=27 // pred_region
          %182 = dma.done %s174, 256
        $region32: #{tpu_custom_call.1} parent=27 // pred_fallthru
          _
        // Predicated region
        $region33: #{tpu_custom_call.1} parent=27 // pred_check
          %p183 = pneg %p78
        $region34: #{tpu_custom_call.1} parent=27 // pred_check_branch
          %185 = sbr.rel (%p183) target = $region36
        $region35: #{tpu_custom_call.1} parent=27 // pred_region
          %187 = dma.done [#allocation5], 16
        $region36: #{tpu_custom_call.1} parent=27 // pred_fallthru
          _
        %s188 = sand.u32 %s39, 1
        %s189 = scalar_lea.sflag [#allocation3], %s188
        %s190 = sand.u32 %s39, 1
        %s191 = smul.addr %s190, 16
        %s192 = scalar_lea.vmem [#allocation2], %s191
        %p193 = pneg %p52
        %p194 = pneg %p49
        %p195 = pneg %p78
        %p196 = pneg %p75
        %p197 = pneg %p104
        %p198 = pneg %p101
        %s199 = sand.u32 %s91, 1
        %s200 = sand.u32 %s91, 1
        %s201 = smul.addr %s200, 16
        %s202 = scalar_lea.vmem [#allocation6], %s201
        %s203 = smul.u32 2, %s21
        %s204 = ssub.s32 3, %s203
        %p205 = scmp.lt.s32.totalorder %s204, 2
        %s206 = scalar_select %p205, %s204, 2
        %s207 = smul.u32 8, %s206
        %s208 = smul.u32 2, %s21
        %s209 = ssub.s32 3, %s208
        %p210 = scmp.lt.s32.totalorder %s209, 2
        %s211 = scalar_select %p210, %s209, 2
        %s212 = smul.u32 8, %s211
        %v213 = vld [vmem:[%s177] sm:$0xff]
        %v214 = vld [vmem:[%s177 + $0x8] sm:$0xff]
        %v215 = vld [vmem:[#allocation4] sm:$0x1]
        %v217 = vperm.slane %v215, 0
        %v219 = vmul.f32 %v213, %v217
        %v220 = vmul.f32 %v214, %v217
        %vm221 = vcmask 261120
        %v222 = vsel %vm221, %v219, 0.0
        %223 = vadd.xlane.f32.xlu0 %v222
        %v224 = vpop.xlane.xlu0 %223
        %v225 = vsel %vm221, %v220, 0.0
        %226 = vadd.xlane.f32.xlu0 %v225
        %v227 = vpop.xlane.xlu0 %226
        %vm228 = vcmask 7168
        %229 = vst.msk [vmem:[%s202] sm:$0xff] %vm228, %v224
        %230 = vst.msk [vmem:[%s202 + $0x8] sm:$0xff] %vm228, %v227
        %s231 = sand.u32 %s91, 1
        %s232 = sand.u32 %s91, 1
        %s233 = smul.addr %s232, 16
        %s234 = scalar_lea.vmem [#allocation6], %s233
        // Predicated region
        $region37: #{tpu_custom_call.1} parent=27 // pred_check
          %p235 = pneg %p101
        $region38: #{tpu_custom_call.1} parent=27 // pred_check_branch
          %237 = sbr.rel (%p235) target = $region40
        $region39: #{tpu_custom_call.1} parent=27 // pred_region
          %s238 = smul.u32 2, %s21
          %s239 = ssub.s32 3, %s238
          %p240 = scmp.lt.s32.totalorder %s239, 2
          %s241 = scalar_select %p240, %s239, 2
          %s242 = smul.u32 8, %s241
          %p243 = scmp.ne.s32.totalorder 0, %s242
          %s244 = smul.addr %s238, 8
          %s245 = scalar_lea.vmem %s2, %s244
          // Predicated region
          $region41: #{tpu_custom_call.1} parent=39 // pred_check
            %p246 = pneg %p243
          $region42: #{tpu_custom_call.1} parent=39 // pred_check_branch
            %248 = sbr.rel (%p246) target = $region44
          $region43: #{tpu_custom_call.1} parent=39 // pred_region
            // Predicated region
            $region45: #{tpu_custom_call.1} parent=43 // pred_check
              _
            $region46: #{tpu_custom_call.1} parent=43 // pred_check_branch
              %250 = sbr.rel (0) target = $region48
            $region47: #{tpu_custom_call.1} parent=43 // pred_region
              // Predicated region
              $region67: #{tpu_custom_call.1} parent=47 // pred_check
                _
              $region68: #{tpu_custom_call.1} parent=47 // pred_check_branch
                %302 = sbr.rel (0) target = $region70
              $region69: #{tpu_custom_call.1} parent=47 // pred_region
                %s303 = sshrl.u32 %s241, 1
                // While loop
                $region71: #{tpu_custom_call.1} parent=69 // loop_pre_header
                  _
                $region72: #{tpu_custom_call.1} parent=69 // loop_header
                  %s305 = sphi 0, %s307
                  %p306 = scmp.ge.s32.totalorder %s305, %s303
                  %s310 = sphi 0, %s319
                  %s311 = sphi %s234, %s322
                  %s312 = sphi %s245, %s323
                $region73: #{tpu_custom_call.1} parent=69 // loop_header_branch
                  %309 = sbr.rel (%p306) target = $region77
                $region74: #{tpu_custom_call.1} parent=69 // loop_body
                  %v313 = vld [vmem:[%s311] sm:$0xff]
                  %314 = vst [vmem:[%s312] sm:$0xff] %v313
                  %v315 = vld [vmem:[%s311 + $0x8] sm:$0xff]
                  %316 = vst [vmem:[%s312 + $0x8] sm:$0xff] %v315
                  %s317 = sadd.s32 1, %s310
                  %p318 = scmp.ge.s32.totalorder %s317, %s303
                  %s319 = scalar_select %p318, 0, %s317
                  %s320 = smul.u32 %s319, 16
                  %s321 = smul.u32 %s319, 16
                  %s322 = scalar_lea.vmem %s234, %s320 [#allocation6]
                  %s323 = scalar_lea.vmem %s245, %s321
                $region75: #{tpu_custom_call.1} parent=69 // loop_footer
                  %s307 = sadd.s32 %s305, 1
                $region76: #{tpu_custom_call.1} parent=69 // loop_footer_branch
                  %304 = sbr.rel target = $region72
                $region77: #{tpu_custom_call.1} parent=69 // loop_exit
                  _
                %s324 = sshrl.u32 %s241, 1
                %s325 = sand.u32 %s241, 1
                %s326 = smul.u32 %s324, 2
                %s327 = smul.u32 8, %s326
                %s328 = scalar_lea.vmem %s234, %s327 [#allocation6]
                %s329 = smul.u32 8, %s326
                %s330 = scalar_lea.vmem %s245, %s329
                // While loop
                $region78: #{tpu_custom_call.1} parent=69 // loop_pre_header
                  _
                $region79: #{tpu_custom_call.1} parent=69 // loop_header
                  %s332 = sphi 0, %s334
                  %p333 = scmp.ge.s32.totalorder %s332, %s325
                  %s337 = sphi 0, %s344
                  %s338 = sphi %s328, %s347
                  %s339 = sphi %s330, %s348
                $region80: #{tpu_custom_call.1} parent=69 // loop_header_branch
                  %336 = sbr.rel (%p333) target = $region84
                $region81: #{tpu_custom_call.1} parent=69 // loop_body
                  %v340 = vld [vmem:[%s338] sm:$0xff]
                  %341 = vst [vmem:[%s339] sm:$0xff] %v340
                  %s342 = sadd.s32 1, %s337
                  %p343 = scmp.ge.s32.totalorder %s342, %s325
                  %s344 = scalar_select %p343, 0, %s342
                  %s345 = smul.u32 %s344, 8
                  %s346 = smul.u32 %s344, 8
                  %s347 = scalar_lea.vmem %s328, %s345 [#allocation6]
                  %s348 = scalar_lea.vmem %s330, %s346
                $region82: #{tpu_custom_call.1} parent=69 // loop_footer
                  %s334 = sadd.s32 %s332, 1
                $region83: #{tpu_custom_call.1} parent=69 // loop_footer_branch
                  %331 = sbr.rel target = $region79
                $region84: #{tpu_custom_call.1} parent=69 // loop_exit
                  _
              $region70: #{tpu_custom_call.1} parent=47 // pred_fallthru
                _
              // Predicated region
              $region85: #{tpu_custom_call.1} parent=47 // pred_check
                _
              $region86: #{tpu_custom_call.1} parent=47 // pred_check_branch
                %350 = sbr.rel target = $region88
              $region87: #{tpu_custom_call.1} parent=47 // pred_region
                _
              $region88: #{tpu_custom_call.1} parent=47 // pred_fallthru
                _
            $region48: #{tpu_custom_call.1} parent=43 // pred_fallthru
              _
            // Predicated region
            $region49: #{tpu_custom_call.1} parent=43 // pred_check
              _
            $region50: #{tpu_custom_call.1} parent=43 // pred_check_branch
              %252 = sbr.rel target = $region52
            $region51: #{tpu_custom_call.1} parent=43 // pred_region
              %s254 = ssub.s32 256, 1
              %s255 = sshrl.u32 %s241, 1
              // While loop
              $region53: #{tpu_custom_call.1} parent=51 // loop_pre_header
                _
              $region54: #{tpu_custom_call.1} parent=51 // loop_header
                %s257 = sphi 0, %s259
                %p258 = scmp.ge.s32.totalorder %s257, %s255
                %s262 = sphi 0, %s271
                %s263 = sphi %s234, %s274
                %s264 = sphi %s245, %s275
              $region55: #{tpu_custom_call.1} parent=51 // loop_header_branch
                %261 = sbr.rel (%p258) target = $region59
              $region56: #{tpu_custom_call.1} parent=51 // loop_body
                %v265 = vld [vmem:[%s263] sm:%s254]
                %266 = vst [vmem:[%s264] sm:%s254] %v265
                %v267 = vld [vmem:[%s263 + $0x8] sm:%s254]
                %268 = vst [vmem:[%s264 + $0x8] sm:%s254] %v267
                %s269 = sadd.s32 1, %s262
                %p270 = scmp.ge.s32.totalorder %s269, %s255
                %s271 = scalar_select %p270, 0, %s269
                %s272 = smul.u32 %s271, 16
                %s273 = smul.u32 %s271, 16
                %s274 = scalar_lea.vmem %s234, %s272 [#allocation6]
                %s275 = scalar_lea.vmem %s245, %s273
              $region57: #{tpu_custom_call.1} parent=51 // loop_footer
                %s259 = sadd.s32 %s257, 1
              $region58: #{tpu_custom_call.1} parent=51 // loop_footer_branch
                %256 = sbr.rel target = $region54
              $region59: #{tpu_custom_call.1} parent=51 // loop_exit
                _
              %s276 = sshrl.u32 %s241, 1
              %s277 = sand.u32 %s241, 1
              %s278 = smul.u32 %s276, 2
              %s279 = smul.u32 8, %s278
              %s280 = scalar_lea.vmem %s234, %s279 [#allocation6]
              %s281 = smul.u32 8, %s278
              %s282 = scalar_lea.vmem %s245, %s281
              // While loop
              $region60: #{tpu_custom_call.1} parent=51 // loop_pre_header
                _
              $region61: #{tpu_custom_call.1} parent=51 // loop_header
                %s284 = sphi 0, %s286
                %p285 = scmp.ge.s32.totalorder %s284, %s277
                %s289 = sphi 0, %s296
                %s290 = sphi %s280, %s299
                %s291 = sphi %s282, %s300
              $region62: #{tpu_custom_call.1} parent=51 // loop_header_branch
                %288 = sbr.rel (%p285) target = $region66
              $region63: #{tpu_custom_call.1} parent=51 // loop_body
                %v292 = vld [vmem:[%s290] sm:%s254]
                %293 = vst [vmem:[%s291] sm:%s254] %v292
                %s294 = sadd.s32 1, %s289
                %p295 = scmp.ge.s32.totalorder %s294, %s277
                %s296 = scalar_select %p295, 0, %s294
                %s297 = smul.u32 %s296, 8
                %s298 = smul.u32 %s296, 8
                %s299 = scalar_lea.vmem %s280, %s297 [#allocation6]
                %s300 = scalar_lea.vmem %s282, %s298
              $region64: #{tpu_custom_call.1} parent=51 // loop_footer
                %s286 = sadd.s32 %s284, 1
              $region65: #{tpu_custom_call.1} parent=51 // loop_footer_branch
                %283 = sbr.rel target = $region61
              $region66: #{tpu_custom_call.1} parent=51 // loop_exit
                _
            $region52: #{tpu_custom_call.1} parent=43 // pred_fallthru
              _
          $region44: #{tpu_custom_call.1} parent=39 // pred_fallthru
            _
          %351 = vnop
        $region40: #{tpu_custom_call.1} parent=27 // pred_fallthru
          _
      $region28: #{tpu_custom_call.1} parent=5 // pred_fallthru
        _
      %p352 = scmp.le.s32.totalorder 2, %s12
      // Predicated region
      $region89: #{tpu_custom_call.1} parent=5 // pred_check
        %p353 = pneg %p352
      $region90: #{tpu_custom_call.1} parent=5 // pred_check_branch
        %355 = sbr.rel (%p353) target = $region92
      $region91: #{tpu_custom_call.1} parent=5 // pred_region
        %s356 = ssub.s32 %s12, 2
        // Predicated region
        $region93: #{tpu_custom_call.1} parent=91 // pred_check
          %p357 = pneg %p107
        $region94: #{tpu_custom_call.1} parent=91 // pred_check_branch
          %359 = sbr.rel (%p357) target = $region96
        $region95: #{tpu_custom_call.1} parent=91 // pred_region
          %s360 = sand.u32 %s92, 1
          %s361 = sand.u32 %s92, 1
          %s362 = smul.addr %s361, 16
          %s363 = scalar_lea.vmem [#allocation6], %s362
        $region96: #{tpu_custom_call.1} parent=91 // pred_fallthru
          _
      $region92: #{tpu_custom_call.1} parent=5 // pred_fallthru
        _
    $region6: #{tpu_custom_call.1} parent=1 // loop_footer
      %s16 = sadd.s32 1, %s12
    $region7: #{tpu_custom_call.1} parent=1 // loop_footer_branch
      %11 = sbr.rel target = $region3
    $region8: #{tpu_custom_call.1} parent=1 // loop_exit
      _
    %364 = vsyncpa [#allocation3], 1
    %s365 = scalar_lea.sflag [#allocation3], 1
    %366 = vsyncpa %s365, 1
    %367 = vsyncpa [#allocation5], 1

</llo_original>
